<compile_context>
chip_gen: v5e
topology: v5e:2x2
jax: 0.10.0
libtpu: 0.0.40
codegen_flags: <defaults>
</compile_context>

<pallas_src>
import jax
import jax.numpy as jnp
from jax import lax
from jax.experimental import pallas as pl
from jax.experimental.pallas import tpu as pltpu

LANE = 128          # TPU lane width; hidden / class dims are padded to this
NEG_INF = -1e30


# ------------------------------ fused kernel --------------------------------

def _net_fused_kernel(x_ref, w1_ref, b1_ref, maskb_ref, w2_ref, b2_ref,
                      beta_ref, o_ref):
    f32 = jnp.float32
    bf16 = jnp.bfloat16

    # ---- stage 1: h = relu(x @ W1 + b1) ------------------------------------
    h = lax.dot_general(
        x_ref[...], w1_ref[...],                    # both already bf16
        dimension_numbers=(((1,), (0,)), ((), ())),
        preferred_element_type=f32)
    h = jnp.maximum(h + b1_ref[...], 0.0)           # (N, LANE); pad cols stay 0

    # additive edge bias, cast once and reused by both propagation stages
    maskb = maskb_ref[...].astype(f32)              # (N, N): 0 / -1e30

    # ---- stages 2/3: AGNN propagation (dense masked attention) -------------
    def prop(h, beta):
        sumsq = jnp.sum(h * h, axis=-1, keepdims=True)
        # F.normalize's eps=1e-12 clamp on ||x|| == 1e-24 clamp on ||x||^2;
        # fold beta into the normalized features (O(N*H), not O(N^2)).
        xn = h * (beta * lax.rsqrt(jnp.maximum(sumsq, 1e-24)))
        xn_b = xn.astype(bf16)
        scores = lax.dot_general(                   # beta * cosine sim, (N, N)
            xn_b, xn_b,
            dimension_numbers=(((1,), (1,)), ((), ())),
            preferred_element_type=f32)
        scores = scores + maskb                     # non-edges -> -1e30
        m = jnp.max(scores, axis=-1, keepdims=True)
        e = jnp.exp(scores - m)                     # non-edges underflow to 0
        alpha = e * pl.reciprocal(jnp.sum(e, axis=-1, keepdims=True),
                                  approx=True)
        return lax.dot_general(                     # alpha @ h, (N, LANE)
            alpha.astype(bf16), h.astype(bf16),
            dimension_numbers=(((1,), (0,)), ((), ())),
            preferred_element_type=f32)

    h = prop(h, beta_ref[0])    # prop1: AGNNConv(requires_grad=False), beta=1
    h = prop(h, beta_ref[1])    # prop2: AGNNConv(requires_grad=True),  beta=1

    # ---- stage 4: y = log_softmax(h @ W2 + b2) ------------------------------
    logits = lax.dot_general(
        h.astype(bf16), w2_ref[...],
        dimension_numbers=(((1,), (0,)), ((), ())),
        preferred_element_type=f32)
    logits = logits + b2_ref[...]    # padded class columns biased to -1e30
    m = jnp.max(logits, axis=-1, keepdims=True)
    z = logits - m
    lse = jnp.log(jnp.sum(jnp.exp(z), axis=-1, keepdims=True))
    o_ref[...] = z - lse             # padded cols are huge-negative, sliced off


# ------------------------------ wrappers -------------------------------------

def _full_spec(shape):
    # whole-array VMEM block (block_shape == full dims satisfies tiling rules)
    return pl.BlockSpec(shape, lambda i: tuple(0 for _ in shape))


def build_mask_bias(edge_index, num_nodes):
    # PyG flow source_to_target: edge (j -> i) => target i aggregates source j.
    # AGNNConv adds self-loops; with a dense additive bias that is simply
    # "set diagonal to 0".  0.0 on edges, -1e30 elsewhere.  Shipped as bf16
    # (0 and -1e30 are both representable; exp underflows to 0 either way)
    # to halve the dominant DMA.  Dense bias dedupes duplicate edges (fine
    # for this synthetic test).
    src, dst = edge_index[0], edge_index[1]
    bias = jnp.full((num_nodes, num_nodes), NEG_INF, jnp.float32)
    bias = bias.at[dst, src].set(0.0)
    diag = jnp.arange(num_nodes)
    bias = bias.at[diag, diag].set(0.0)
    return bias.astype(jnp.bfloat16)


def net_forward(x, edge_index, params):
    # F.dropout with training=False is identity (eval-mode forward).
    N, F_in = x.shape
    H = params["w1"].shape[1]
    C = params["w2"].shape[1]
    N_pad = ((N + 7) // 8) * 8   # sublane-align the node axis

    # Lane-dense padding: zero hidden columns are exact no-ops through relu /
    # normalize / attention; padded class logits get a -1e30 bias so the
    # 128-lane log_softmax equals log_softmax over the real C classes.
    # Pad rows (if any) only self-attend (diagonal bias 0) and are sliced off.
    x_p = jnp.zeros((N_pad, F_in), jnp.float32).at[:N, :].set(x)
    x_p = x_p.astype(jnp.bfloat16)
    w1p = (jnp.zeros((F_in, LANE), jnp.float32)
           .at[:, :H].set(params["w1"]).astype(jnp.bfloat16))
    b1p = jnp.zeros((1, LANE), jnp.float32).at[:, :H].set(params["b1"])
    w2p = (jnp.zeros((LANE, LANE), jnp.float32)
           .at[:H, :C].set(params["w2"]).astype(jnp.bfloat16))
    b2p = jnp.full((1, LANE), NEG_INF, jnp.float32).at[:, :C].set(params["b2"])
    betas = jnp.asarray([params["beta1"], params["beta2"]], jnp.float32)

    maskb = build_mask_bias(edge_index, N_pad)

    out = pl.pallas_call(
        _net_fused_kernel,
        out_shape=jax.ShapeDtypeStruct((N_pad, LANE), jnp.float32),
        grid=(1,),
        in_specs=[
            _full_spec((N_pad, F_in)),    # x (bf16)
            _full_spec((F_in, LANE)),     # W1 (bf16, padded)
            _full_spec((1, LANE)),        # b1 (f32, padded)
            _full_spec((N_pad, N_pad)),   # additive edge-mask bias (bf16)
            _full_spec((LANE, LANE)),     # W2 (bf16, padded)
            _full_spec((1, LANE)),        # b2 (f32, -1e30 on pad cols)
            pl.BlockSpec(memory_space=pltpu.MemorySpace.SMEM),  # betas
        ],
        out_specs=_full_spec((N_pad, LANE)),
        compiler_params=pltpu.CompilerParams(
            dimension_semantics=("arbitrary",)),
    )(x_p, w1p, b1p, maskb, w2p, b2p, betas)
    return out[:N, :C]


# ------------------------------ reference ------------------------------------

def net_forward_ref(x, edge_index, params):
    # Pure-JAX f32 reference of the same forward (for a tolerance check).
    N = x.shape[0]
    src, dst = edge_index[0], edge_index[1]
    mask = jnp.zeros((N, N), bool).at[dst, src].set(True)
    mask = mask.at[jnp.arange(N), jnp.arange(N)].set(True)
    h = jax.nn.relu(x @ params["w1"] + params["b1"])
    for beta in (params["beta1"], params["beta2"]):
        norm = jnp.sqrt(jnp.sum(h * h, axis=-1, keepdims=True))
        xn = h / jnp.maximum(norm, 1e-12)
        s = beta * (xn @ xn.T)
        s = jnp.where(mask, s, NEG_INF)
        alpha = jax.nn.softmax(s, axis=-1)
        h = alpha @ h
    logits = h @ params["w2"] + params["b2"]
    return jax.nn.log_softmax(logits, axis=1)


def init_params(key, num_features, hidden, num_classes):
    k1, k2, k3, k4 = jax.random.split(key, 4)
    lim1 = 1.0 / jnp.sqrt(num_features)
    lim2 = 1.0 / jnp.sqrt(hidden)
    return {
        # stored already transposed: (in, out), so kernel does x @ W
        "w1": jax.random.uniform(k1, (num_features, hidden), jnp.float32, -lim1, lim1),
        "b1": jax.random.uniform(k2, (1, hidden), jnp.float32, -lim1, lim1),
        "w2": jax.random.uniform(k3, (hidden, num_classes), jnp.float32, -lim2, lim2),
        "b2": jax.random.uniform(k4, (1, num_classes), jnp.float32, -lim2, lim2),
        "beta1": 1.0,   # AGNNConv(requires_grad=False): beta fixed at 1
        "beta2": 1.0,   # AGNNConv(requires_grad=True):  beta initialized to 1
    }


if __name__ == "__main__":
    N_NODES = 32          # number of graph nodes
    NUM_FEATURES = 64     # dataset.num_features (synthetic)
    HIDDEN = 16
    NUM_CLASSES = 8       # dataset.num_classes (synthetic)
    N_EDGES = 96

    key = jax.random.PRNGKey(0)
    kx, ke, kp = jax.random.split(key, 3)

    x = jax.random.normal(kx, (N_NODES, NUM_FEATURES), jnp.float32)
    edge_index = jax.random.randint(ke, (2, N_EDGES), 0, N_NODES, jnp.int32)
    params = init_params(kp, NUM_FEATURES, HIDDEN, NUM_CLASSES)

    out = net_forward(x, edge_index, params)
    out = jax.block_until_ready(out)

    assert out.shape == (N_NODES, NUM_CLASSES)
    assert bool(jnp.all(jnp.isfinite(out)))
    # rows of log_softmax should exp-sum to ~1 (exact f32 softmax in-kernel)
    assert jnp.allclose(jnp.sum(jnp.exp(out), axis=1), 1.0, atol=1e-4)
    # matches the exact f32 reference within bf16 / approx-reciprocal drift
    ref = net_forward_ref(x, edge_index, params)
    assert float(jnp.max(jnp.abs(out - ref))) < 5e-2
    print("KERNEL_OK")
</pallas_src>

<mosaic_0001>
module attributes {stable_mosaic.version = 11 : i64} {
  func.func @_net_fused_kernel(%arg0: i32, %arg1: memref<32x64xbf16, #tpu.memory_space<vmem>>, %arg2: memref<64x128xbf16, #tpu.memory_space<vmem>>, %arg3: memref<1x128xf32, #tpu.memory_space<vmem>>, %arg4: memref<32x32xbf16, #tpu.memory_space<vmem>>, %arg5: memref<128x128xbf16, #tpu.memory_space<vmem>>, %arg6: memref<1x128xf32, #tpu.memory_space<vmem>>, %arg7: memref<2xf32, #tpu.memory_space<smem>>, %arg8: memref<32x128xf32, #tpu.memory_space<vmem>>) attributes {dimension_semantics = [#tpu.dimension_semantics<arbitrary>], iteration_bounds = array<i64: 1>, scalar_prefetch = 0 : i64, scratch_operands = 0 : i64, tpu.core_type = #tpu.core_type<tc>, window_params = [{pipeline_mode = #tpu.pipeline_mode<synchronous>, transform_indices = @transform_0, window_bounds = array<i64: 32, 64>}, {pipeline_mode = #tpu.pipeline_mode<synchronous>, transform_indices = @transform_1, window_bounds = array<i64: 64, 128>}, {pipeline_mode = #tpu.pipeline_mode<synchronous>, transform_indices = @transform_2, window_bounds = array<i64: 1, 128>}, {pipeline_mode = #tpu.pipeline_mode<synchronous>, transform_indices = @transform_3, window_bounds = array<i64: 32, 32>}, {pipeline_mode = #tpu.pipeline_mode<synchronous>, transform_indices = @transform_4, window_bounds = array<i64: 128, 128>}, {pipeline_mode = #tpu.pipeline_mode<synchronous>, transform_indices = @transform_5, window_bounds = array<i64: 1, 128>}, {transform_indices = @transform_6, window_bounds = array<i64: 2>}, {pipeline_mode = #tpu.pipeline_mode<synchronous>, transform_indices = @transform_7, window_bounds = array<i64: 32, 128>}]} {
    %c0 = arith.constant 0 : index
    %c0_0 = arith.constant 0 : index
    %0 = vector.load %arg1[%c0, %c0_0] : memref<32x64xbf16, #tpu.memory_space<vmem>>, vector<32x64xbf16>
    %c0_1 = arith.constant 0 : index
    %c0_2 = arith.constant 0 : index
    %1 = vector.load %arg2[%c0_1, %c0_2] : memref<64x128xbf16, #tpu.memory_space<vmem>>, vector<64x128xbf16>
    %cst = arith.constant dense<0.000000e+00> : vector<32x128xf32>
    %2 = tpu.matmul %0, %1, %cst {dimension_numbers = #tpu.dot_dimension_numbers<[1], [0], [0], [1], [0, 0, 1, 1], [], []>} : vector<32x64xbf16>, vector<64x128xbf16>, vector<32x128xf32> -> vector<32x128xf32>
    %c0_3 = arith.constant 0 : index
    %c0_4 = arith.constant 0 : index
    %3 = vector.load %arg3[%c0_3, %c0_4] : memref<1x128xf32, #tpu.memory_space<vmem>>, vector<1x128xf32>
    %4 = vector.broadcast %3 : vector<1x128xf32> to vector<32x128xf32>
    %5 = arith.addf %2, %4 : vector<32x128xf32>
    %cst_5 = arith.constant 0.000000e+00 : f32
    %6 = vector.broadcast %cst_5 : f32 to vector<32x128xf32>
    %7 = arith.maximumf %5, %6 : vector<32x128xf32>
    %c0_6 = arith.constant 0 : index
    %c0_7 = arith.constant 0 : index
    %8 = vector.load %arg4[%c0_6, %c0_7] : memref<32x32xbf16, #tpu.memory_space<vmem>>, vector<32x32xbf16>
    %9 = arith.extf %8 : vector<32x32xbf16> to vector<32x32xf32>
    %c0_8 = arith.constant 0 : index
    %10 = memref.load %arg7[%c0_8] : memref<2xf32, #tpu.memory_space<smem>>
    %11 = arith.mulf %7, %7 : vector<32x128xf32>
    %cst_9 = arith.constant dense<0.000000e+00> : vector<32xf32>
    %12 = vector.multi_reduction <add>, %11, %cst_9 [1] : vector<32x128xf32> to vector<32xf32>
    %13 = vector.shape_cast %12 : vector<32xf32> to vector<32x1xf32>
    %cst_10 = arith.constant 1.000000e-24 : f32
    %14 = vector.broadcast %cst_10 : f32 to vector<32x1xf32>
    %15 = arith.maximumf %13, %14 : vector<32x1xf32>
    %16 = math.rsqrt %15 : vector<32x1xf32>
    %17 = vector.broadcast %10 : f32 to vector<32x1xf32>
    %18 = arith.mulf %17, %16 : vector<32x1xf32>
    %19 = vector.broadcast %18 : vector<32x1xf32> to vector<32x128xf32>
    %20 = arith.mulf %7, %19 : vector<32x128xf32>
    %21 = arith.truncf %20 : vector<32x128xf32> to vector<32x128xbf16>
    %cst_11 = arith.constant dense<0.000000e+00> : vector<32x32xf32>
    %22 = tpu.matmul %21, %21, %cst_11 {dimension_numbers = #tpu.dot_dimension_numbers<[1], [1], [0], [0], [0, 0, 1, 0], [], []>} : vector<32x128xbf16>, vector<32x128xbf16>, vector<32x32xf32> -> vector<32x32xf32>
    %23 = arith.addf %22, %9 : vector<32x32xf32>
    %cst_12 = arith.constant dense<0xFF800000> : vector<32xf32>
    %24 = vector.multi_reduction <maximumf>, %23, %cst_12 [1] : vector<32x32xf32> to vector<32xf32>
    %25 = vector.shape_cast %24 : vector<32xf32> to vector<32x1xf32>
    %26 = vector.broadcast %25 : vector<32x1xf32> to vector<32x32xf32>
    %27 = arith.subf %23, %26 : vector<32x32xf32>
    %28 = math.exp %27 : vector<32x32xf32>
    %cst_13 = arith.constant dense<0.000000e+00> : vector<32xf32>
    %29 = vector.multi_reduction <add>, %28, %cst_13 [1] : vector<32x32xf32> to vector<32xf32>
    %30 = vector.shape_cast %29 : vector<32xf32> to vector<32x1xf32>
    %31 = tpu.reciprocal %30 {approx = true} : vector<32x1xf32> -> vector<32x1xf32>
    %32 = vector.broadcast %31 : vector<32x1xf32> to vector<32x32xf32>
    %33 = arith.mulf %28, %32 : vector<32x32xf32>
    %34 = arith.truncf %33 : vector<32x32xf32> to vector<32x32xbf16>
    %35 = arith.truncf %7 : vector<32x128xf32> to vector<32x128xbf16>
    %cst_14 = arith.constant dense<0.000000e+00> : vector<32x128xf32>
    %36 = tpu.matmul %34, %35, %cst_14 {dimension_numbers = #tpu.dot_dimension_numbers<[1], [0], [0], [1], [0, 0, 1, 1], [], []>} : vector<32x32xbf16>, vector<32x128xbf16>, vector<32x128xf32> -> vector<32x128xf32>
    %c1 = arith.constant 1 : index
    %37 = memref.load %arg7[%c1] : memref<2xf32, #tpu.memory_space<smem>>
    %38 = arith.mulf %36, %36 : vector<32x128xf32>
    %cst_15 = arith.constant dense<0.000000e+00> : vector<32xf32>
    %39 = vector.multi_reduction <add>, %38, %cst_15 [1] : vector<32x128xf32> to vector<32xf32>
    %40 = vector.shape_cast %39 : vector<32xf32> to vector<32x1xf32>
    %cst_16 = arith.constant 1.000000e-24 : f32
    %41 = vector.broadcast %cst_16 : f32 to vector<32x1xf32>
    %42 = arith.maximumf %40, %41 : vector<32x1xf32>
    %43 = math.rsqrt %42 : vector<32x1xf32>
    %44 = vector.broadcast %37 : f32 to vector<32x1xf32>
    %45 = arith.mulf %44, %43 : vector<32x1xf32>
    %46 = vector.broadcast %45 : vector<32x1xf32> to vector<32x128xf32>
    %47 = arith.mulf %36, %46 : vector<32x128xf32>
    %48 = arith.truncf %47 : vector<32x128xf32> to vector<32x128xbf16>
    %cst_17 = arith.constant dense<0.000000e+00> : vector<32x32xf32>
    %49 = tpu.matmul %48, %48, %cst_17 {dimension_numbers = #tpu.dot_dimension_numbers<[1], [1], [0], [0], [0, 0, 1, 0], [], []>} : vector<32x128xbf16>, vector<32x128xbf16>, vector<32x32xf32> -> vector<32x32xf32>
    %50 = arith.addf %49, %9 : vector<32x32xf32>
    %cst_18 = arith.constant dense<0xFF800000> : vector<32xf32>
    %51 = vector.multi_reduction <maximumf>, %50, %cst_18 [1] : vector<32x32xf32> to vector<32xf32>
    %52 = vector.shape_cast %51 : vector<32xf32> to vector<32x1xf32>
    %53 = vector.broadcast %52 : vector<32x1xf32> to vector<32x32xf32>
    %54 = arith.subf %50, %53 : vector<32x32xf32>
    %55 = math.exp %54 : vector<32x32xf32>
    %cst_19 = arith.constant dense<0.000000e+00> : vector<32xf32>
    %56 = vector.multi_reduction <add>, %55, %cst_19 [1] : vector<32x32xf32> to vector<32xf32>
    %57 = vector.shape_cast %56 : vector<32xf32> to vector<32x1xf32>
    %58 = tpu.reciprocal %57 {approx = true} : vector<32x1xf32> -> vector<32x1xf32>
    %59 = vector.broadcast %58 : vector<32x1xf32> to vector<32x32xf32>
    %60 = arith.mulf %55, %59 : vector<32x32xf32>
    %61 = arith.truncf %60 : vector<32x32xf32> to vector<32x32xbf16>
    %62 = arith.truncf %36 : vector<32x128xf32> to vector<32x128xbf16>
    %cst_20 = arith.constant dense<0.000000e+00> : vector<32x128xf32>
    %63 = tpu.matmul %61, %62, %cst_20 {dimension_numbers = #tpu.dot_dimension_numbers<[1], [0], [0], [1], [0, 0, 1, 1], [], []>} : vector<32x32xbf16>, vector<32x128xbf16>, vector<32x128xf32> -> vector<32x128xf32>
    %64 = arith.truncf %63 : vector<32x128xf32> to vector<32x128xbf16>
    %c0_21 = arith.constant 0 : index
    %c0_22 = arith.constant 0 : index
    %65 = vector.load %arg5[%c0_21, %c0_22] : memref<128x128xbf16, #tpu.memory_space<vmem>>, vector<128x128xbf16>
    %cst_23 = arith.constant dense<0.000000e+00> : vector<32x128xf32>
    %66 = tpu.matmul %64, %65, %cst_23 {dimension_numbers = #tpu.dot_dimension_numbers<[1], [0], [0], [1], [0, 0, 1, 1], [], []>} : vector<32x128xbf16>, vector<128x128xbf16>, vector<32x128xf32> -> vector<32x128xf32>
    %c0_24 = arith.constant 0 : index
    %c0_25 = arith.constant 0 : index
    %67 = vector.load %arg6[%c0_24, %c0_25] : memref<1x128xf32, #tpu.memory_space<vmem>>, vector<1x128xf32>
    %68 = vector.broadcast %67 : vector<1x128xf32> to vector<32x128xf32>
    %69 = arith.addf %66, %68 : vector<32x128xf32>
    %cst_26 = arith.constant dense<0xFF800000> : vector<32xf32>
    %70 = vector.multi_reduction <maximumf>, %69, %cst_26 [1] : vector<32x128xf32> to vector<32xf32>
    %71 = vector.shape_cast %70 : vector<32xf32> to vector<32x1xf32>
    %72 = vector.broadcast %71 : vector<32x1xf32> to vector<32x128xf32>
    %73 = arith.subf %69, %72 : vector<32x128xf32>
    %74 = math.exp %73 : vector<32x128xf32>
    %cst_27 = arith.constant dense<0.000000e+00> : vector<32xf32>
    %75 = vector.multi_reduction <add>, %74, %cst_27 [1] : vector<32x128xf32> to vector<32xf32>
    %76 = vector.shape_cast %75 : vector<32xf32> to vector<32x1xf32>
    %77 = math.log %76 : vector<32x1xf32>
    %78 = vector.broadcast %77 : vector<32x1xf32> to vector<32x128xf32>
    %79 = arith.subf %73, %78 : vector<32x128xf32>
    %c0_28 = arith.constant 0 : index
    %c0_29 = arith.constant 0 : index
    %80 = vector.load %arg8[%c0_28, %c0_29] : memref<32x128xf32, #tpu.memory_space<vmem>>, vector<32x128xf32>
    tpu.vector_store %arg8[%c0_28, %c0_29], %79 {strides = array<i32>} : memref<32x128xf32, #tpu.memory_space<vmem>>, vector<32x128xf32>,
    return
  }
  func.func @transform_0(%arg0: i32) -> (i32, i32) {
    %c0_i32 = arith.constant 0 : i32
    %c0_i32_0 = arith.constant 0 : i32
    %c0_i32_1 = arith.constant 0 : i32
    return %c0_i32, %c0_i32_0 : i32, i32
  }
  func.func @transform_1(%arg0: i32) -> (i32, i32) {
    %c0_i32 = arith.constant 0 : i32
    %c0_i32_0 = arith.constant 0 : i32
    %c0_i32_1 = arith.constant 0 : i32
    return %c0_i32, %c0_i32_0 : i32, i32
  }
  func.func @transform_2(%arg0: i32) -> (i32, i32) {
    %c0_i32 = arith.constant 0 : i32
    %c0_i32_0 = arith.constant 0 : i32
    %c0_i32_1 = arith.constant 0 : i32
    return %c0_i32, %c0_i32_0 : i32, i32
  }
  func.func @transform_3(%arg0: i32) -> (i32, i32) {
    %c0_i32 = arith.constant 0 : i32
    %c0_i32_0 = arith.constant 0 : i32
    %c0_i32_1 = arith.constant 0 : i32
    return %c0_i32, %c0_i32_0 : i32, i32
  }
  func.func @transform_4(%arg0: i32) -> (i32, i32) {
    %c0_i32 = arith.constant 0 : i32
    %c0_i32_0 = arith.constant 0 : i32
    %c0_i32_1 = arith.constant 0 : i32
    return %c0_i32, %c0_i32_0 : i32, i32
  }
  func.func @transform_5(%arg0: i32) -> (i32, i32) {
    %c0_i32 = arith.constant 0 : i32
    %c0_i32_0 = arith.constant 0 : i32
    %c0_i32_1 = arith.constant 0 : i32
    return %c0_i32, %c0_i32_0 : i32, i32
  }
  func.func @transform_6(%arg0: i32) -> i32 {
    %c0_i32 = arith.constant 0 : i32
    %c0_i32_0 = arith.constant 0 : i32
    return %c0_i32 : i32
  }
  func.func @transform_7(%arg0: i32) -> (i32, i32) {
    %c0_i32 = arith.constant 0 : i32
    %c0_i32_0 = arith.constant 0 : i32
    %c0_i32_1 = arith.constant 0 : i32
    return %c0_i32, %c0_i32_0 : i32, i32
  }
}

</mosaic_0001>

<llo_original>
// kernel: tpu_custom_call.1
$region0: #{tpu_custom_call.1}
  #allocation0 [shape = 'u32[]', space=smem, size = 0x4, offset = 0x4, fixed_abs, tag = 'smem constant byte address 0x4 - core index']
  #allocation1 [shape = 'u32[72,128]{1,0:T(1,128)}', space=vmem, size = 0x9000, scoped, tag = 'internal scratch']
  %s0 = inlined_call_operand.hbm [shape: bf16[32,64], index: 0, kind: input, shape index: {}]
  %s1 = inlined_call_operand.hbm [shape: bf16[64,128], index: 1, kind: input, shape index: {}]
  %s2 = inlined_call_operand.vmem [shape: f32[1,128], index: 2, kind: input, shape index: {}]
  %s3 = inlined_call_operand.hbm [shape: bf16[32,32], index: 3, kind: input, shape index: {}]
  %s4 = inlined_call_operand.hbm [shape: bf16[128,128], index: 4, kind: input, shape index: {}]
  %s5 = inlined_call_operand.vmem [shape: f32[1,128], index: 5, kind: input, shape index: {}]
  %s6 = inlined_call_operand.vmem [shape: f32[2], index: 6, kind: input, shape index: {}]
  %s7 = inlined_call_operand.hbm [shape: f32[32,128], index: 7, kind: output, shape index: {}]
  %s8 = sld [smem:[#allocation0]]
  $region58: #{tpu_custom_call.1} parent=0
    _
  %s10 = ssub.s32 1, %s8
  %s11 = scalar_select 0, %s10, %s8
  $region1: #{tpu_custom_call.1} parent=0
    #allocation2 [shape = 'u8[8192]{0}', space=vmem, size = 0x2000, scoped, tag = 'input window, operand 0, single buffered']
    #allocation3 [shape = 's32[1]{0}', space=sflag, size = 0x4, scoped, tag = 'scoped memory for tpu_custom_call.1']
    #allocation4 [shape = 's32[1]{0}', space=sflag, size = 0x4, scoped, tag = 'scoped memory for tpu_custom_call.1']
    #allocation5 [shape = 's32[1]{0}', space=sflag, size = 0x4, scoped, tag = 'scoped memory for tpu_custom_call.1']
    #allocation6 [shape = 'u8[16384]{0}', space=vmem, size = 0x4000, scoped, tag = 'input window, operand 1, single buffered']
    #allocation7 [shape = 's32[1]{0}', space=sflag, size = 0x4, scoped, tag = 'scoped memory for tpu_custom_call.1']
    #allocation8 [shape = 'u8[8192]{0}', space=vmem, size = 0x2000, scoped, tag = 'input window, operand 3, single buffered']
    #allocation9 [shape = 'u8[32768]{0}', space=vmem, size = 0x8000, scoped, tag = 'input window, operand 4, single buffered']
    #allocation10 [shape = 's32[1]{0}', space=sflag, size = 0x4, scoped, tag = 'scoped memory for tpu_custom_call.1']
    #allocation11 [shape = 'u8[512]{0}', space=smem, size = 0x200, scoped, tag = 'input window, operand 6, single buffered']
    #allocation12 [shape = 'u8[16384]{0}', space=vmem, size = 0x4000, scoped, tag = 'output window, operand 0, single buffered']
    %12 = vsyncpa [#allocation3], 0
    %13 = vsyncpa [#allocation7], 0
    %14 = vsyncpa [#allocation10], 0
    %15 = vsyncpa [#allocation5], 0
    %16 = vsyncpa [#allocation4], 0
    // Predicated region
    $region2: #{tpu_custom_call.1} parent=1 // pred_check
      _
    $region3: #{tpu_custom_call.1} parent=1 // pred_check_branch
      %18 = sbr.rel (0) target = $region5
    $region4: #{tpu_custom_call.1} parent=1 // pred_region
      %20 = vsyncadd [#allocation3], 0
      %s21 = sshll.u32 %s0, 4
      %s22 = int_to_ptr.hbm [resolvable:$true] %s21
      %s23 = sshll.u32 [#allocation2], 4
      %s24 = int_to_ptr.vmem [resolvable:$true] %s23
      %29 = dma.hbm_to_vmem [thread:$0]  %s22, 256, %s24, [#allocation3], 64, 64, 4
    $region5: #{tpu_custom_call.1} parent=1 // pred_fallthru
      _
    // Predicated region
    $region6: #{tpu_custom_call.1} parent=1 // pred_check
      _
    $region7: #{tpu_custom_call.1} parent=1 // pred_check_branch
      %31 = sbr.rel (0) target = $region9
    $region8: #{tpu_custom_call.1} parent=1 // pred_region
      %33 = vsyncadd [#allocation7], 0
      %s34 = sshll.u32 %s1, 4
      %s35 = int_to_ptr.hbm [resolvable:$true] %s34
      %s36 = sshll.u32 [#allocation6], 4
      %s37 = int_to_ptr.vmem [resolvable:$true] %s36
      %42 = dma.hbm_to_vmem [thread:$0]  %s35, 512, %s37, [#allocation7], 64, 64, 4
    $region9: #{tpu_custom_call.1} parent=1 // pred_fallthru
      _
    // Predicated region
    $region10: #{tpu_custom_call.1} parent=1 // pred_check
      _
    $region11: #{tpu_custom_call.1} parent=1 // pred_check_branch
      %44 = sbr.rel (0) target = $region13
    $region12: #{tpu_custom_call.1} parent=1 // pred_region
      _
    $region13: #{tpu_custom_call.1} parent=1 // pred_fallthru
      _
    // Predicated region
    $region14: #{tpu_custom_call.1} parent=1 // pred_check
      _
    $region15: #{tpu_custom_call.1} parent=1 // pred_check_branch
      %46 = sbr.rel (0) target = $region17
    $region16: #{tpu_custom_call.1} parent=1 // pred_region
      %48 = vsyncadd [#allocation7], 0
      %s49 = sshll.u32 %s3, 4
      %s50 = int_to_ptr.hbm [resolvable:$true] %s49
      %s51 = sshll.u32 [#allocation8], 4
      %s52 = int_to_ptr.vmem [resolvable:$true] %s51
      %57 = dma.hbm_to_vmem [thread:$0]  %s50, 256, %s52, [#allocation7], 64, 64, 4
    $region17: #{tpu_custom_call.1} parent=1 // pred_fallthru
      _
    // Predicated region
    $region18: #{tpu_custom_call.1} parent=1 // pred_check
      _
    $region19: #{tpu_custom_call.1} parent=1 // pred_check_branch
      %59 = sbr.rel (0) target = $region21
    $region20: #{tpu_custom_call.1} parent=1 // pred_region
      %61 = vsyncadd [#allocation10], 0
      %s62 = sshll.u32 %s4, 4
      %s63 = int_to_ptr.hbm [resolvable:$true] %s62
      %s64 = sshll.u32 [#allocation9], 4
      %s65 = int_to_ptr.vmem [resolvable:$true] %s64
      %70 = dma.hbm_to_vmem [thread:$0]  %s63, 1024, %s65, [#allocation10], 64, 64, 4
    $region21: #{tpu_custom_call.1} parent=1 // pred_fallthru
      _
    // Predicated region
    $region22: #{tpu_custom_call.1} parent=1 // pred_check
      _
    $region23: #{tpu_custom_call.1} parent=1 // pred_check_branch
      %72 = sbr.rel (0) target = $region25
    $region24: #{tpu_custom_call.1} parent=1 // pred_region
      _
    $region25: #{tpu_custom_call.1} parent=1 // pred_fallthru
      _
    // Predicated region
    $region26: #{tpu_custom_call.1} parent=1 // pred_check
      _
    $region27: #{tpu_custom_call.1} parent=1 // pred_check_branch
      %74 = sbr.rel (0) target = $region29
    $region28: #{tpu_custom_call.1} parent=1 // pred_region
      %76 = vsyncadd [#allocation5], 0
      %s78 = sshll.u32 %s6, 4
      %s79 = int_to_ptr.vmem [resolvable:$true] %s78
      %81 = dma.vmem_to_smem %s79, 16, [#allocation11], [#allocation5]
    $region29: #{tpu_custom_call.1} parent=1 // pred_fallthru
      _
    // Predicated region
    $region30: #{tpu_custom_call.1} parent=1 // pred_check
      _
    $region31: #{tpu_custom_call.1} parent=1 // pred_check_branch
      %83 = sbr.rel (0) target = $region33
    $region32: #{tpu_custom_call.1} parent=1 // pred_region
      %85 = dma.done [#allocation3], 256
    $region33: #{tpu_custom_call.1} parent=1 // pred_fallthru
      _
    // Predicated region
    $region34: #{tpu_custom_call.1} parent=1 // pred_check
      _
    $region35: #{tpu_custom_call.1} parent=1 // pred_check_branch
      %87 = sbr.rel (0) target = $region37
    $region36: #{tpu_custom_call.1} parent=1 // pred_region
      %89 = dma.done [#allocation7], 512
    $region37: #{tpu_custom_call.1} parent=1 // pred_fallthru
      _
    // Predicated region
    $region38: #{tpu_custom_call.1} parent=1 // pred_check
      _
    $region39: #{tpu_custom_call.1} parent=1 // pred_check_branch
      %91 = sbr.rel (0) target = $region41
    $region40: #{tpu_custom_call.1} parent=1 // pred_region
      %93 = dma.done [#allocation7], 256
    $region41: #{tpu_custom_call.1} parent=1 // pred_fallthru
      _
    // Predicated region
    $region42: #{tpu_custom_call.1} parent=1 // pred_check
      _
    $region43: #{tpu_custom_call.1} parent=1 // pred_check_branch
      %95 = sbr.rel (0) target = $region45
    $region44: #{tpu_custom_call.1} parent=1 // pred_region
      %97 = dma.done [#allocation10], 1024
    $region45: #{tpu_custom_call.1} parent=1 // pred_fallthru
      _
    // Predicated region
    $region46: #{tpu_custom_call.1} parent=1 // pred_check
      _
    $region47: #{tpu_custom_call.1} parent=1 // pred_check_branch
      %99 = sbr.rel (0) target = $region49
    $region48: #{tpu_custom_call.1} parent=1 // pred_region
      %101 = dma.done [#allocation5], 16
    $region49: #{tpu_custom_call.1} parent=1 // pred_fallthru
      _
    %102 = sfence
    %v104 = vld [vmem:[#allocation2] sm:$0xf]
    %v105 = vld [vmem:[#allocation2 + $0x4] sm:$0xf]
    %v106 = vld [vmem:[#allocation2 + $0x8] sm:$0xf]
    %v107 = vld [vmem:[#allocation2 + $0xc] sm:$0xf]
    %v108 = vld [vmem:[#allocation6] sm:$0xf]
    %v109 = vld [vmem:[#allocation6 + $0x4] sm:$0xf]
    %v110 = vld [vmem:[#allocation6 + $0x8] sm:$0xf]
    %v111 = vld [vmem:[#allocation6 + $0xc] sm:$0xf]
    %v112 = vld [vmem:[#allocation6 + $0x10] sm:$0xf]
    %v113 = vld [vmem:[#allocation6 + $0x14] sm:$0xf]
    %v114 = vld [vmem:[#allocation6 + $0x18] sm:$0xf]
    %v115 = vld [vmem:[#allocation6 + $0x1c] sm:$0xf]
    %v116 = vld [vmem:[%s2] sm:$0x1]
    %v118 = vperm.slane %v116, 0
    %v124 = vunpack.c.l.b16 %v104
    %v125 = vunpack.c.l.b16 %v105
    %v126 = vunpack.c.l.b16 %v106
    %v127 = vunpack.c.l.b16 %v107
    %v128 = vpack.c.b16 %v125, %v124
    %v129 = vpack.c.b16 %v127, %v126
    %v138 = vunpack.c.l.b16 %v108
    %v139 = vunpack.c.l.b16 %v109
    %v140 = vunpack.c.l.b16 %v110
    %v141 = vunpack.c.l.b16 %v111
    %v142 = vunpack.c.l.b16 %v112
    %v143 = vunpack.c.l.b16 %v113
    %v144 = vunpack.c.l.b16 %v114
    %v145 = vunpack.c.l.b16 %v115
    %v146 = vpack.c.b16 %v139, %v138
    %v147 = vpack.c.b16 %v141, %v140
    %v148 = vpack.c.b16 %v143, %v142
    %v149 = vpack.c.b16 %v145, %v144
    %vm154 = vcmask 523264
    %v156 = vsel %vm154, %v128, 0
    %v159 = vsel %vm154, %v129, 0
    %161 = vmatpush.bf16.msra.mxu0 0
    %162 = vmatpush.bf16.msra.mxu0 0
    %163 = vmatpush.bf16.msra.mxu0 0
    %164 = vmatpush.bf16.msra.mxu0 0
    %165 = vmatpush.bf16.msra.mxu0 %v149
    %166 = vmatpush.bf16.msra.mxu0 %v148
    %167 = vmatpush.bf16.msra.mxu0 %v147
    %168 = vmatpush.bf16.msra.mxu0 %v146
    %169 = vmatmul.bf16.gmra.mxu0 %v156
    %v170 = vpop.f32.mrf.mxu0
    %v171 = vadd.f32 %v118, %v170
    %v172 = vpop.f32.mrf.mxu0
    %v173 = vadd.f32 %v118, %v172
    %174 = vmatmul.bf16.gmra.mxu0 %v159
    %v175 = vpop.f32.mrf.mxu0
    %v176 = vadd.f32 %v118, %v175
    %v177 = vpop.f32.mrf.mxu0
    %v178 = vadd.f32 %v118, %v177
    %179 = vdwg.mxu0
    %v180 = vmax.f32 %v171, 0.0
    %v181 = vmax.f32 %v173, 0.0
    %v182 = vmax.f32 %v176, 0.0
    %v183 = vmax.f32 %v178, 0.0
    %v184 = vld [vmem:[#allocation8] sm:$0xf]
    %v185 = vld [vmem:[#allocation8 + $0x4] sm:$0xf]
    %v186 = vld [vmem:[#allocation8 + $0x8] sm:$0xf]
    %v187 = vld [vmem:[#allocation8 + $0xc] sm:$0xf]
    %v188 = vunpack.c.l.bf16 %v184
    %v189 = vunpack.c.l.bf16 %v185
    %v190 = vunpack.c.l.bf16 %v186
    %v191 = vunpack.c.l.bf16 %v187
    %s192 = sld [smem:[#allocation11]]
    %v193 = vmul.f32 %v180, %v180
    %v194 = vmul.f32 %v181, %v181
    %v195 = vmul.f32 %v182, %v182
    %v196 = vmul.f32 %v183, %v183
    %197 = vadd.xlane.f32.xlu0 %v193
    %v198 = vpop.xlane.xlu0 %197
    %199 = vadd.xlane.f32.xlu0 %v194
    %v200 = vpop.xlane.xlu0 %199
    %201 = vadd.xlane.f32.xlu0 %v195
    %v202 = vpop.xlane.xlu0 %201
    %203 = vadd.xlane.f32.xlu0 %v196
    %v204 = vpop.xlane.xlu0 %203
    %v205 = vmax.f32 %v198, 1e-24
    %v206 = vmax.f32 %v200, 1e-24
    %v207 = vmax.f32 %v202, 1e-24
    %v208 = vmax.f32 %v204, 1e-24
    %v209 = vrsqrt.pop %v205
    %v210 = vmul.f32 %v209, %v205
    %v211 = vmul.f32 %v210, %v209
    %v212 = vmul.f32 0.5, %v211
    %v213 = vsub.f32 1.5, %v212
    %v214 = vmul.f32 %v209, %v213
    %vm215 = vweird.f32 %v205
    %vm216 = vweird.f32 %v209
    %vm217 = vmor %vm215, %vm216
    %v218 = vsel %vm217, %v209, %v214
    %v219 = vrsqrt.pop %v206
    %v220 = vmul.f32 %v219, %v206
    %v221 = vmul.f32 %v220, %v219
    %v222 = vmul.f32 0.5, %v221
    %v223 = vsub.f32 1.5, %v222
    %v224 = vmul.f32 %v219, %v223
    %vm225 = vweird.f32 %v206
    %vm226 = vweird.f32 %v219
    %vm227 = vmor %vm225, %vm226
    %v228 = vsel %vm227, %v219, %v224
    %v229 = vrsqrt.pop %v207
    %v230 = vmul.f32 %v229, %v207
    %v231 = vmul.f32 %v230, %v229
    %v232 = vmul.f32 0.5, %v231
    %v233 = vsub.f32 1.5, %v232
    %v234 = vmul.f32 %v229, %v233
    %vm235 = vweird.f32 %v207
    %vm236 = vweird.f32 %v229
    %vm237 = vmor %vm235, %vm236
    %v238 = vsel %vm237, %v229, %v234
    %v239 = vrsqrt.pop %v208
    %v240 = vmul.f32 %v239, %v208
    %v241 = vmul.f32 %v240, %v239
    %v242 = vmul.f32 0.5, %v241
    %v243 = vsub.f32 1.5, %v242
    %v244 = vmul.f32 %v239, %v243
    %vm245 = vweird.f32 %v208
    %vm246 = vweird.f32 %v239
    %vm247 = vmor %vm245, %vm246
    %v248 = vsel %vm247, %v239, %v244
    %v249 = vstv %s192
    %v250 = vmul.f32 %v249, %v218
    %v251 = vmul.f32 %v249, %v228
    %v252 = vmul.f32 %v249, %v238
    %v253 = vmul.f32 %v249, %v248
    %v254 = vmul.f32 %v180, %v250
    %v255 = vmul.f32 %v181, %v251
    %v256 = vmul.f32 %v182, %v252
    %v257 = vmul.f32 %v183, %v253
    %v258 = vpack.c.bf16 %v255, %v254
    %v259 = vpack.c.bf16 %v257, %v256
    %260 = vmatpush.bf16.xpose.msra.mxu0 0
    %261 = vmatpush.bf16.xpose.msra.mxu0 0
    %262 = vmatpush.bf16.xpose.msra.mxu0 0
    %263 = vmatpush.bf16.xpose.msra.mxu0 0
    %264 = vmatpush.bf16.xpose.msra.mxu0 0
    %265 = vmatpush.bf16.xpose.msra.mxu0 0
    %266 = vmatpush.bf16.xpose.msra.mxu0 %v259
    %267 = vmatpush.bf16.xpose.msra.mxu0 %v258
    %268 = vmatmul.bf16.gmra.mxu0 %v258
    %v269 = vpop.f32.mrf.mxu0
    %v270 = vadd.f32 %v188, %v269
    %v271 = vpop.f32.mrf.mxu0
    %v272 = vadd.f32 %v189, %v271
    %273 = vmatmul.bf16.gmra.mxu0 %v259
    %v274 = vpop.f32.mrf.mxu0
    %v275 = vadd.f32 %v190, %v274
    %v276 = vpop.f32.mrf.mxu0
    %v277 = vadd.f32 %v191, %v276
    %278 = vdwg.mxu0
    %vm279 = vcmask 261120
    %v280 = vsel %vm279, %v270, -inf
    %281 = vmax.xlane.f32.xlu0 %v280
    %v282 = vpop.xlane.xlu0 %281
    %v283 = vsel %vm279, %v272, -inf
    %284 = vmax.xlane.f32.xlu0 %v283
    %v285 = vpop.xlane.xlu0 %284
    %v286 = vsel %vm279, %v275, -inf
    %287 = vmax.xlane.f32.xlu0 %v286
    %v288 = vpop.xlane.xlu0 %287
    %v289 = vsel %vm279, %v277, -inf
    %290 = vmax.xlane.f32.xlu0 %v289
    %v291 = vpop.xlane.xlu0 %290
    %v292 = vsub.f32 %v270, %v282
    %v293 = vsub.f32 %v272, %v285
    %v294 = vsub.f32 %v275, %v288
    %v295 = vsub.f32 %v277, %v291
    %v296 = vmul.f32 %v292, 1.442695
    %v297 = vpow.pop %v296
    %v298 = vmul.f32 %v293, 1.442695
    %v299 = vpow.pop %v298
    %v300 = vmul.f32 %v294, 1.442695
    %v301 = vpow.pop %v300
    %v302 = vmul.f32 %v295, 1.442695
    %v303 = vpow.pop %v302
    %v304 = vsel %vm279, %v297, 0.0
    %305 = vadd.xlane.f32.xlu0 %v304
    %v306 = vpop.xlane.xlu0 %305
    %v307 = vsel %vm279, %v299, 0.0
    %308 = vadd.xlane.f32.xlu0 %v307
    %v309 = vpop.xlane.xlu0 %308
    %v310 = vsel %vm279, %v301, 0.0
    %311 = vadd.xlane.f32.xlu0 %v310
    %v312 = vpop.xlane.xlu0 %311
    %v313 = vsel %vm279, %v303, 0.0
    %314 = vadd.xlane.f32.xlu0 %v313
    %v315 = vpop.xlane.xlu0 %314
    %v316 = vrcp.pop %v306
    %v317 = vrcp.pop %v309
    %v318 = vrcp.pop %v312
    %v319 = vrcp.pop %v315
    %v320 = vmul.f32 %v297, %v316
    %v321 = vmul.f32 %v299, %v317
    %v322 = vmul.f32 %v301, %v318
    %v323 = vmul.f32 %v303, %v319
    %v324 = vpack.c.bf16 %v321, %v320
    %v325 = vpack.c.bf16 %v323, %v322
    %v326 = vpack.c.bf16 %v181, %v180
    %v327 = vpack.c.bf16 %v183, %v182
    %v329 = vsel %vm279, %v324, 0
    %v332 = vsel %vm279, %v325, 0
    %334 = vmatpush.bf16.msra.mxu0 0
    %335 = vmatpush.bf16.msra.mxu0 0
    %336 = vmatpush.bf16.msra.mxu0 0
    %337 = vmatpush.bf16.msra.mxu0 0
    %338 = vmatpush.bf16.msra.mxu0 0
    %339 = vmatpush.bf16.msra.mxu0 0
    %340 = vmatpush.bf16.msra.mxu0 %v327
    %341 = vmatpush.bf16.msra.mxu0 %v326
    %342 = vmatmul.bf16.gmra.mxu0 %v329
    %v343 = vpop.f32.mrf.mxu0
    %v344 = vadd.f32 0.0, %v343
    %v345 = vpop.f32.mrf.mxu0
    %v346 = vadd.f32 0.0, %v345
    %347 = vmatmul.bf16.gmra.mxu0 %v332
    %v348 = vpop.f32.mrf.mxu0
    %v349 = vadd.f32 0.0, %v348
    %v350 = vpop.f32.mrf.mxu0
    %v351 = vadd.f32 0.0, %v350
    %352 = vdwg.mxu0
    %s353 = sld [smem:[#allocation11 + $0x1]]
    %v354 = vmul.f32 %v344, %v344
    %v355 = vmul.f32 %v346, %v346
    %v356 = vmul.f32 %v349, %v349
    %v357 = vmul.f32 %v351, %v351
    %358 = vadd.xlane.f32.xlu0 %v354
    %v359 = vpop.xlane.xlu0 %358
    %360 = vadd.xlane.f32.xlu0 %v355
    %v361 = vpop.xlane.xlu0 %360
    %362 = vadd.xlane.f32.xlu0 %v356
    %v363 = vpop.xlane.xlu0 %362
    %364 = vadd.xlane.f32.xlu0 %v357
    %v365 = vpop.xlane.xlu0 %364
    %v366 = vmax.f32 %v359, 1e-24
    %v367 = vmax.f32 %v361, 1e-24
    %v368 = vmax.f32 %v363, 1e-24
    %v369 = vmax.f32 %v365, 1e-24
    %v370 = vrsqrt.pop %v366
    %v371 = vmul.f32 %v370, %v366
    %v372 = vmul.f32 %v371, %v370
    %v373 = vmul.f32 0.5, %v372
    %v374 = vsub.f32 1.5, %v373
    %v375 = vmul.f32 %v370, %v374
    %vm376 = vweird.f32 %v366
    %vm377 = vweird.f32 %v370
    %vm378 = vmor %vm376, %vm377
    %v379 = vsel %vm378, %v370, %v375
    %v380 = vrsqrt.pop %v367
    %v381 = vmul.f32 %v380, %v367
    %v382 = vmul.f32 %v381, %v380
    %v383 = vmul.f32 0.5, %v382
    %v384 = vsub.f32 1.5, %v383
    %v385 = vmul.f32 %v380, %v384
    %vm386 = vweird.f32 %v367
    %vm387 = vweird.f32 %v380
    %vm388 = vmor %vm386, %vm387
    %v389 = vsel %vm388, %v380, %v385
    %v390 = vrsqrt.pop %v368
    %v391 = vmul.f32 %v390, %v368
    %v392 = vmul.f32 %v391, %v390
    %v393 = vmul.f32 0.5, %v392
    %v394 = vsub.f32 1.5, %v393
    %v395 = vmul.f32 %v390, %v394
    %vm396 = vweird.f32 %v368
    %vm397 = vweird.f32 %v390
    %vm398 = vmor %vm396, %vm397
    %v399 = vsel %vm398, %v390, %v395
    %v400 = vrsqrt.pop %v369
    %v401 = vmul.f32 %v400, %v369
    %v402 = vmul.f32 %v401, %v400
    %v403 = vmul.f32 0.5, %v402
    %v404 = vsub.f32 1.5, %v403
    %v405 = vmul.f32 %v400, %v404
    %vm406 = vweird.f32 %v369
    %vm407 = vweird.f32 %v400
    %vm408 = vmor %vm406, %vm407
    %v409 = vsel %vm408, %v400, %v405
    %v410 = vstv %s353
    %v411 = vmul.f32 %v410, %v379
    %v412 = vmul.f32 %v410, %v389
    %v413 = vmul.f32 %v410, %v399
    %v414 = vmul.f32 %v410, %v409
    %v415 = vmul.f32 %v344, %v411
    %v416 = vmul.f32 %v346, %v412
    %v417 = vmul.f32 %v349, %v413
    %v418 = vmul.f32 %v351, %v414
    %v419 = vpack.c.bf16 %v416, %v415
    %v420 = vpack.c.bf16 %v418, %v417
    %421 = vmatpush.bf16.xpose.msra.mxu0 0
    %422 = vmatpush.bf16.xpose.msra.mxu0 0
    %423 = vmatpush.bf16.xpose.msra.mxu0 0
    %424 = vmatpush.bf16.xpose.msra.mxu0 0
    %425 = vmatpush.bf16.xpose.msra.mxu0 0
    %426 = vmatpush.bf16.xpose.msra.mxu0 0
    %427 = vmatpush.bf16.xpose.msra.mxu0 %v420
    %428 = vmatpush.bf16.xpose.msra.mxu0 %v419
    %429 = vmatmul.bf16.gmra.mxu0 %v419
    %v430 = vpop.f32.mrf.mxu0
    %v431 = vadd.f32 %v188, %v430
    %v432 = vpop.f32.mrf.mxu0
    %v433 = vadd.f32 %v189, %v432
    %434 = vmatmul.bf16.gmra.mxu0 %v420
    %v435 = vpop.f32.mrf.mxu0
    %v436 = vadd.f32 %v190, %v435
    %v437 = vpop.f32.mrf.mxu0
    %v438 = vadd.f32 %v191, %v437
    %439 = vdwg.mxu0
    %v440 = vsel %vm279, %v431, -inf
    %441 = vmax.xlane.f32.xlu0 %v440
    %v442 = vpop.xlane.xlu0 %441
    %v443 = vsel %vm279, %v433, -inf
    %444 = vmax.xlane.f32.xlu0 %v443
    %v445 = vpop.xlane.xlu0 %444
    %v446 = vsel %vm279, %v436, -inf
    %447 = vmax.xlane.f32.xlu0 %v446
    %v448 = vpop.xlane.xlu0 %447
    %v449 = vsel %vm279, %v438, -inf
    %450 = vmax.xlane.f32.xlu0 %v449
    %v451 = vpop.xlane.xlu0 %450
    %v452 = vsub.f32 %v431, %v442
    %v453 = vsub.f32 %v433, %v445
    %v454 = vsub.f32 %v436, %v448
    %v455 = vsub.f32 %v438, %v451
    %v456 = vmul.f32 %v452, 1.442695
    %v457 = vpow.pop %v456
    %v458 = vmul.f32 %v453, 1.442695
    %v459 = vpow.pop %v458
    %v460 = vmul.f32 %v454, 1.442695
    %v461 = vpow.pop %v460
    %v462 = vmul.f32 %v455, 1.442695
    %v463 = vpow.pop %v462
    %v464 = vsel %vm279, %v457, 0.0
    %465 = vadd.xlane.f32.xlu0 %v464
    %v466 = vpop.xlane.xlu0 %465
    %v467 = vsel %vm279, %v459, 0.0
    %468 = vadd.xlane.f32.xlu0 %v467
    %v469 = vpop.xlane.xlu0 %468
    %v470 = vsel %vm279, %v461, 0.0
    %471 = vadd.xlane.f32.xlu0 %v470
    %v472 = vpop.xlane.xlu0 %471
    %v473 = vsel %vm279, %v463, 0.0
    %474 = vadd.xlane.f32.xlu0 %v473
    %v475 = vpop.xlane.xlu0 %474
    %v476 = vrcp.pop %v466
    %v477 = vrcp.pop %v469
    %v478 = vrcp.pop %v472
    %v479 = vrcp.pop %v475
    %v480 = vmul.f32 %v457, %v476
    %v481 = vmul.f32 %v459, %v477
    %v482 = vmul.f32 %v461, %v478
    %v483 = vmul.f32 %v463, %v479
    %v484 = vpack.c.bf16 %v481, %v480
    %v485 = vpack.c.bf16 %v483, %v482
    %v486 = vpack.c.bf16 %v346, %v344
    %v487 = vpack.c.bf16 %v351, %v349
    %v489 = vsel %vm279, %v484, 0
    %v492 = vsel %vm279, %v485, 0
    %494 = vmatpush.bf16.msra.mxu0 0
    %495 = vmatpush.bf16.msra.mxu0 0
    %496 = vmatpush.bf16.msra.mxu0 0
    %497 = vmatpush.bf16.msra.mxu0 0
    %498 = vmatpush.bf16.msra.mxu0 0
    %499 = vmatpush.bf16.msra.mxu0 0
    %500 = vmatpush.bf16.msra.mxu0 %v487
    %501 = vmatpush.bf16.msra.mxu0 %v486
    %502 = vmatmul.bf16.gmra.mxu0 %v489
    %v503 = vpop.f32.mrf.mxu0
    %v504 = vadd.f32 0.0, %v503
    %v505 = vpop.f32.mrf.mxu0
    %v506 = vadd.f32 0.0, %v505
    %507 = vmatmul.bf16.gmra.mxu0 %v492
    %v508 = vpop.f32.mrf.mxu0
    %v509 = vadd.f32 0.0, %v508
    %v510 = vpop.f32.mrf.mxu0
    %v511 = vadd.f32 0.0, %v510
    %512 = vdwg.mxu0
    %v513 = vpack.c.bf16 %v506, %v504
    %v514 = vpack.c.bf16 %v511, %v509
    %v515 = vld [vmem:[#allocation9] sm:$0xf]
    %v516 = vld [vmem:[#allocation9 + $0x4] sm:$0xf]
    %v517 = vld [vmem:[#allocation9 + $0x8] sm:$0xf]
    %v518 = vld [vmem:[#allocation9 + $0xc] sm:$0xf]
    %v519 = vld [vmem:[#allocation9 + $0x10] sm:$0xf]
    %v520 = vld [vmem:[#allocation9 + $0x14] sm:$0xf]
    %v521 = vld [vmem:[#allocation9 + $0x18] sm:$0xf]
    %v522 = vld [vmem:[#allocation9 + $0x1c] sm:$0xf]
    %v523 = vld [vmem:[#allocation9 + $0x20] sm:$0xf]
    %v524 = vld [vmem:[#allocation9 + $0x24] sm:$0xf]
    %v525 = vld [vmem:[#allocation9 + $0x28] sm:$0xf]
    %v526 = vld [vmem:[#allocation9 + $0x2c] sm:$0xf]
    %v527 = vld [vmem:[#allocation9 + $0x30] sm:$0xf]
    %v528 = vld [vmem:[#allocation9 + $0x34] sm:$0xf]
    %v529 = vld [vmem:[#allocation9 + $0x38] sm:$0xf]
    %v530 = vld [vmem:[#allocation9 + $0x3c] sm:$0xf]
    %v531 = vld [vmem:[%s5] sm:$0x1]
    %v533 = vperm.slane %v531, 0
    %v551 = vunpack.c.l.b16 %v515
    %v552 = vunpack.c.l.b16 %v516
    %v553 = vunpack.c.l.b16 %v517
    %v554 = vunpack.c.l.b16 %v518
    %v555 = vunpack.c.l.b16 %v519
    %v556 = vunpack.c.l.b16 %v520
    %v557 = vunpack.c.l.b16 %v521
    %v558 = vunpack.c.l.b16 %v522
    %v559 = vunpack.c.l.b16 %v523
    %v560 = vunpack.c.l.b16 %v524
    %v561 = vunpack.c.l.b16 %v525
    %v562 = vunpack.c.l.b16 %v526
    %v563 = vunpack.c.l.b16 %v527
    %v564 = vunpack.c.l.b16 %v528
    %v565 = vunpack.c.l.b16 %v529
    %v566 = vunpack.c.l.b16 %v530
    %v567 = vpack.c.b16 %v552, %v551
    %v568 = vpack.c.b16 %v554, %v553
    %v569 = vpack.c.b16 %v556, %v555
    %v570 = vpack.c.b16 %v558, %v557
    %v571 = vpack.c.b16 %v560, %v559
    %v572 = vpack.c.b16 %v562, %v561
    %v573 = vpack.c.b16 %v564, %v563
    %v574 = vpack.c.b16 %v566, %v565
    %583 = vmatpush.bf16.msra.mxu0 %v574
    %584 = vmatpush.bf16.msra.mxu0 %v573
    %585 = vmatpush.bf16.msra.mxu0 %v572
    %586 = vmatpush.bf16.msra.mxu0 %v571
    %587 = vmatpush.bf16.msra.mxu0 %v570
    %588 = vmatpush.bf16.msra.mxu0 %v569
    %589 = vmatpush.bf16.msra.mxu0 %v568
    %590 = vmatpush.bf16.msra.mxu0 %v567
    %591 = vmatmul.bf16.gmra.mxu0 %v513
    %v592 = vpop.f32.mrf.mxu0
    %v593 = vadd.f32 %v533, %v592
    %v594 = vpop.f32.mrf.mxu0
    %v595 = vadd.f32 %v533, %v594
    %596 = vmatmul.bf16.gmra.mxu0 %v514
    %v597 = vpop.f32.mrf.mxu0
    %v598 = vadd.f32 %v533, %v597
    %v599 = vpop.f32.mrf.mxu0
    %v600 = vadd.f32 %v533, %v599
    %601 = vdwg.mxu0
    %602 = vmax.xlane.f32.xlu0 %v593
    %v603 = vpop.xlane.xlu0 %602
    %604 = vmax.xlane.f32.xlu0 %v595
    %v605 = vpop.xlane.xlu0 %604
    %606 = vmax.xlane.f32.xlu0 %v598
    %v607 = vpop.xlane.xlu0 %606
    %608 = vmax.xlane.f32.xlu0 %v600
    %v609 = vpop.xlane.xlu0 %608
    %v610 = vsub.f32 %v593, %v603
    %v611 = vsub.f32 %v595, %v605
    %v612 = vsub.f32 %v598, %v607
    %v613 = vsub.f32 %v600, %v609
    %v614 = vmul.f32 %v610, 1.442695
    %v615 = vpow.pop %v614
    %v616 = vmul.f32 %v611, 1.442695
    %v617 = vpow.pop %v616
    %v618 = vmul.f32 %v612, 1.442695
    %v619 = vpow.pop %v618
    %v620 = vmul.f32 %v613, 1.442695
    %v621 = vpow.pop %v620
    %622 = vadd.xlane.f32.xlu0 %v615
    %v623 = vpop.xlane.xlu0 %622
    %624 = vadd.xlane.f32.xlu0 %v617
    %v625 = vpop.xlane.xlu0 %624
    %626 = vadd.xlane.f32.xlu0 %v619
    %v627 = vpop.xlane.xlu0 %626
    %628 = vadd.xlane.f32.xlu0 %v621
    %v629 = vpop.xlane.xlu0 %628
    %v630 = vlog2.pop %v623
    %v631 = vmul.f32 %v630, 0.6931472
    %v632 = vlog2.pop %v625
    %v633 = vmul.f32 %v632, 0.6931472
    %v634 = vlog2.pop %v627
    %v635 = vmul.f32 %v634, 0.6931472
    %v636 = vlog2.pop %v629
    %v637 = vmul.f32 %v636, 0.6931472
    %v638 = vsub.f32 %v610, %v631
    %v639 = vsub.f32 %v611, %v633
    %v640 = vsub.f32 %v612, %v635
    %v641 = vsub.f32 %v613, %v637
    %642 = vst [vmem:[#allocation12] sm:$0xff] %v638
    %643 = vst [vmem:[#allocation12 + $0x8] sm:$0xff] %v639
    %644 = vst [vmem:[#allocation12 + $0x10] sm:$0xff] %v640
    %645 = vst [vmem:[#allocation12 + $0x18] sm:$0xff] %v641
    // Predicated region
    $region50: #{tpu_custom_call.1} parent=1 // pred_check
      _
    $region51: #{tpu_custom_call.1} parent=1 // pred_check_branch
      %647 = sbr.rel (0) target = $region53
    $region52: #{tpu_custom_call.1} parent=1 // pred_region
      %649 = vsyncadd [#allocation4], 0
      %s650 = sshll.u32 [#allocation12], 4
      %s651 = int_to_ptr.vmem [resolvable:$true] %s650
      %s652 = sshll.u32 %s7, 4
      %s653 = int_to_ptr.hbm [resolvable:$true] %s652
      %658 = dma.vmem_to_hbm [thread:$0]  %s651, 512, %s653, [#allocation4], 128, 128, 8
    $region53: #{tpu_custom_call.1} parent=1 // pred_fallthru
      _
    // Predicated region
    $region54: #{tpu_custom_call.1} parent=1 // pred_check
      _
    $region55: #{tpu_custom_call.1} parent=1 // pred_check_branch
      %660 = sbr.rel (0) target = $region57
    $region56: #{tpu_custom_call.1} parent=1 // pred_region
      %662 = dma.done [#allocation4], 512
    $region57: #{tpu_custom_call.1} parent=1 // pred_fallthru
      _
    %663 = vsyncpa [#allocation3], 1
    %664 = vsyncpa [#allocation7], 1
    %665 = vsyncpa [#allocation10], 1
    %666 = vsyncpa [#allocation4], 1
    %667 = vsyncpa [#allocation5], 1

</llo_original>
